<compile_context>
chip_gen: v5e
topology: v5e:2x2
jax: 0.10.0
libtpu: 0.0.40
codegen_flags: <defaults>
</compile_context>

<pallas_src>
import functools
import math

import jax
import jax.numpy as jnp
from jax.experimental import pallas as pl
from jax.experimental.pallas import tpu as pltpu


def _round_up(x, m):
    return ((x + m - 1) // m) * m


def _lowrank_rnn_kernel(seed_ref, x_ref, w_in_ref, b_in_ref, w_rec_ref,
                        w_fc_ref, b_fc_ref, hid_ref, out_ref,
                        h_scr, inp_scr, noise_scr=None, *,
                        alpha, rnn_std, tc, bsz, b_real, h_real, cdt):
    """One grid step = one chunk of `tc` timesteps (time-major rows, `bsz`
    padded batch rows per timestep)."""
    c = pl.program_id(0)

    @pl.when(c == 0)
    def _init():
        h_scr[...] = jnp.zeros_like(h_scr)
        if rnn_std > 0:
            pltpu.prng_seed(seed_ref[0])

    # Hoisted input projection for the whole chunk: one lane-dense MXU matmul
    # (Tc*B, I) @ (I, H_pad) + bias.  Not on the serial h-dependency chain.
    inp_scr[...] = (
        jnp.dot(x_ref[...].astype(cdt), w_in_ref[...],
                preferred_element_type=jnp.float32)
        + b_in_ref[...])

    if rnn_std > 0:
        # One whole-chunk draw keeps the PRNG off the per-step path.  Matches
        # PyTorch coef sqrt(2*(1/alpha)*std^2).  Mask padded batch rows and
        # padded hidden lanes so the hidden-state padding stays exactly zero.
        coef = math.sqrt(2.0 * (1.0 / alpha) * rnn_std ** 2)
        draw = coef * pltpu.stateful_normal(noise_scr.shape, jnp.float32)
        row = jax.lax.broadcasted_iota(jnp.int32, noise_scr.shape, 0)
        col = jax.lax.broadcasted_iota(jnp.int32, noise_scr.shape, 1)
        keep = ((row % bsz) < b_real) & (col < h_real)
        noise_scr[...] = jnp.where(keep, draw, 0.0)

    leak = 1.0 - alpha

    def step(t, h):
        r0 = pl.multiple_of(t * bsz, bsz)
        if rnn_std > 0:
            # Matches PyTorch: hidden += noise first; the noisy hidden feeds
            # both the recurrent term and the leak term.
            h = h + noise_scr[pl.ds(r0, bsz), :]
        # Single fused recurrent matmul: h @ (U @ V).T  (pre-transposed, bf16
        # operands, f32 accumulate).
        rec = jnp.dot(h.astype(cdt), w_rec_ref[...],
                      preferred_element_type=jnp.float32)
        h_new = jnp.maximum(inp_scr[pl.ds(r0, bsz), :] + rec, 0.0)
        h_out = h * leak + h_new * alpha
        hid_ref[pl.ds(r0, bsz), :] = h_out       # lane-dense (bsz, 128) store
        return h_out

    # Serial dependency chain: partial unroll only (full unroll adds no ILP).
    h_last = jax.lax.fori_loop(0, tc, step, h_scr[...], unroll=min(8, tc))
    h_scr[...] = h_last                          # carry hidden to next chunk

    # Fused readout: fc over the whole chunk's hidden slab in one matmul.
    out_ref[...] = (
        jnp.dot(hid_ref[...].astype(cdt), w_fc_ref[...],
                preferred_element_type=jnp.float32)
        + b_fc_ref[...])


def lowrank_rnn_forward(x, w_in, b_in, U, V, w_fc, b_fc, *,
                        alpha, rnn_std=0.0, seed=0, time_chunk=32,
                        matmul_dtype=jnp.bfloat16):
    """x: (T, B, I); w_in: (H, I); b_in: (H,); U: (H, R); V: (R, H);
    w_fc: (O, H); b_fc: (O,).  Returns (out (T,B,O), rnn_output (T,B,H))."""
    f32 = jnp.float32
    cdt = matmul_dtype
    T, B, I = x.shape
    H = U.shape[0]
    O = w_fc.shape[0]

    Tc = max(1, min(int(time_chunk), T))
    T_pad = _round_up(T, Tc)
    B_pad = _round_up(B, 8)
    H_pad = _round_up(H, 128)
    O_pad = _round_up(O, 128)
    nc = T_pad // Tc
    RC = Tc * B_pad                          # rows per chunk (time-major)

    # --- one-time wrapper-side prep: pad, pre-transpose, fuse U@V, cast ------
    w_in_t = jnp.zeros((I, H_pad), cdt).at[:, :H].set(w_in.T.astype(cdt))
    b_in_p = jnp.zeros((1, H_pad), f32).at[:, :H].set(b_in.astype(f32))
    w_rec_t = jnp.zeros((H_pad, H_pad), cdt).at[:H, :H].set(
        (U.astype(f32) @ V.astype(f32)).T.astype(cdt))
    w_fc_t = jnp.zeros((H_pad, O_pad), cdt).at[:H, :O].set(w_fc.T.astype(cdt))
    b_fc_p = jnp.zeros((1, O_pad), f32).at[:, :O].set(b_fc.astype(f32))

    x_p = jnp.zeros((T_pad, B_pad, I), f32).at[:T, :B, :].set(x.astype(f32))
    x2 = x_p.reshape(T_pad * B_pad, I)       # row = t * B_pad + b

    seed_arr = jnp.array([seed], dtype=jnp.int32)

    kernel = functools.partial(_lowrank_rnn_kernel,
                               alpha=float(alpha), rnn_std=float(rnn_std),
                               tc=Tc, bsz=B_pad, b_real=B, h_real=H, cdt=cdt)

    scratch_shapes = [
        pltpu.VMEM((B_pad, H_pad), f32),     # persistent hidden state
        pltpu.VMEM((RC, H_pad), f32),        # hoisted input projection (chunk)
    ]
    if rnn_std > 0:
        scratch_shapes.append(pltpu.VMEM((RC, H_pad), f32))  # noise (chunk)

    # Weight/bias blocks below have constant index_maps, so Pallas keeps them
    # resident across chunks (no per-step re-DMA).
    grid_spec = pltpu.PrefetchScalarGridSpec(
        num_scalar_prefetch=1,
        grid=(nc,),
        in_specs=[
            pl.BlockSpec((RC, I), lambda c, seed: (c, 0)),         # x chunk
            pl.BlockSpec((I, H_pad), lambda c, seed: (0, 0)),      # W_in.T
            pl.BlockSpec((1, H_pad), lambda c, seed: (0, 0)),      # b_in
            pl.BlockSpec((H_pad, H_pad), lambda c, seed: (0, 0)),  # (U@V).T
            pl.BlockSpec((H_pad, O_pad), lambda c, seed: (0, 0)),  # W_fc.T
            pl.BlockSpec((1, O_pad), lambda c, seed: (0, 0)),      # b_fc
        ],
        out_specs=[
            pl.BlockSpec((RC, H_pad), lambda c, seed: (c, 0)),     # hidden slab
            pl.BlockSpec((RC, O_pad), lambda c, seed: (c, 0)),     # fc out slab
        ],
        scratch_shapes=scratch_shapes,
    )

    # --- VMEM budget (double-buffered blocks + resident weights + scratch) ---
    wb = jnp.dtype(cdt).itemsize
    blk_bytes = RC * I * 4 + RC * H_pad * 4 + RC * O_pad * 4
    w_bytes = (I * H_pad + H_pad * H_pad + H_pad * O_pad) * wb \
        + (H_pad + O_pad) * 4
    scr_bytes = (B_pad * H_pad + RC * H_pad) * 4
    if rnn_std > 0:
        scr_bytes += RC * H_pad * 4
    budget = 2 * blk_bytes + 2 * w_bytes + scr_bytes + (4 << 20)
    # Never lower the default (32 MiB); cap at 100 MiB.  NOTE: v7x only has
    # 64 MiB physical VMEM per TC -- re-derive Tc/H padding before scaling up.
    vmem_limit = int(min(max(budget, 32 << 20), 100 << 20))

    flops = 2 * T_pad * B_pad * (I * H_pad + H_pad * H_pad + H_pad * O_pad)
    bytes_accessed = (T_pad * B_pad * (4 * I + 4 * H_pad + 4 * O_pad)
                      + w_bytes)
    cost = pl.CostEstimate(flops=flops, transcendentals=0,
                           bytes_accessed=bytes_accessed)

    hid2, out2 = pl.pallas_call(
        kernel,
        out_shape=(jax.ShapeDtypeStruct((T_pad * B_pad, H_pad), f32),
                   jax.ShapeDtypeStruct((T_pad * B_pad, O_pad), f32)),
        grid_spec=grid_spec,
        compiler_params=pltpu.CompilerParams(
            dimension_semantics=("arbitrary",),   # chunks carry hidden state
            vmem_limit_bytes=vmem_limit),
        cost_estimate=cost,
    )(seed_arr, x2, w_in_t, b_in_p, w_rec_t, w_fc_t, b_fc_p)

    rnn_output = hid2.reshape(T_pad, B_pad, H_pad)[:T, :B, :H]
    out = out2.reshape(T_pad, B_pad, O_pad)[:T, :B, :O]
    return out, rnn_output


def _reference_forward(x, w_in, b_in, U, V, w_fc, b_fc, *, alpha,
                       dot_dtype=jnp.float32):
    """Pure-JAX reference of the PyTorch forward (rnn_std = 0).

    dot_dtype casts the matmul operands exactly like the Pallas kernel
    (weights + activations), keeping f32 accumulation, so the bf16 kernel can
    be checked tightly while dot_dtype=f32 gives the exact module math.
    """
    f32 = jnp.float32
    cdt = dot_dtype
    w_rec_t = (U.astype(f32) @ V.astype(f32)).T.astype(cdt)  # fused like kernel
    w_in_t = w_in.T.astype(cdt)
    w_fc_t = w_fc.T.astype(cdt)

    def step(h, xt):
        rec = jnp.dot(h.astype(cdt), w_rec_t, preferred_element_type=f32)
        pre = jnp.dot(xt.astype(cdt), w_in_t, preferred_element_type=f32) + b_in
        h_new = jnp.maximum(pre + rec, 0.0)
        h_out = h * (1.0 - alpha) + h_new * alpha
        return h_out, h_out

    h0 = jnp.zeros((x.shape[1], U.shape[0]), f32)
    _, hid = jax.lax.scan(step, h0, x)
    out = jnp.dot(hid.astype(cdt), w_fc_t, preferred_element_type=f32) + b_fc
    return out, hid


if __name__ == "__main__":
    # Small shapes consistent with the module (time-major input).  batch=6
    # exercises batch padding to 8; seq_len=10 with time_chunk=4 exercises the
    # multi-chunk path with a padded tail (T_pad=12).
    input_size, hidden_size, rank, output_size = 4, 32, 2, 3
    seq_len, batch = 10, 6
    dt, tau = 10.0, 100.0
    alpha = dt / tau
    rnn_std = 0.0  # deterministic run

    key = jax.random.PRNGKey(0)
    k_x, k_w, k_b, k_u, k_v, k_fw, k_fb = jax.random.split(key, 7)

    # Parameter init mirroring the PyTorch schemes / shapes.
    bound_in = 1.0 / math.sqrt(input_size)
    w_in = jax.random.uniform(k_w, (hidden_size, input_size),
                              minval=-bound_in, maxval=bound_in,
                              dtype=jnp.float32)
    b_in = jax.random.uniform(k_b, (hidden_size,),
                              minval=-bound_in, maxval=bound_in,
                              dtype=jnp.float32)
    # kaiming_normal_(mode='fan_in', nonlinearity='relu'): std = sqrt(2/fan_in)
    U = (jax.random.normal(k_u, (hidden_size, rank), jnp.float32)
         * math.sqrt(2.0 / rank))
    V = (jax.random.normal(k_v, (rank, hidden_size), jnp.float32)
         * math.sqrt(2.0 / hidden_size))
    bound_fc = 1.0 / math.sqrt(hidden_size)
    w_fc = jax.random.uniform(k_fw, (output_size, hidden_size),
                              minval=-bound_fc, maxval=bound_fc,
                              dtype=jnp.float32)
    b_fc = jax.random.uniform(k_fb, (output_size,),
                              minval=-bound_fc, maxval=bound_fc,
                              dtype=jnp.float32)

    x = jax.random.normal(k_x, (seq_len, batch, input_size), jnp.float32)

    out_ref_f32, hid_ref_f32 = _reference_forward(
        x, w_in, b_in, U, V, w_fc, b_fc, alpha=alpha, dot_dtype=jnp.float32)
    out_ref_bf, hid_ref_bf = _reference_forward(
        x, w_in, b_in, U, V, w_fc, b_fc, alpha=alpha, dot_dtype=jnp.bfloat16)

    # Run 1: exact f32 matmuls, small chunk (multi-chunk + padded tail).
    out_a, hid_a = lowrank_rnn_forward(x, w_in, b_in, U, V, w_fc, b_fc,
                                       alpha=alpha, rnn_std=rnn_std, seed=0,
                                       time_chunk=4,
                                       matmul_dtype=jnp.float32)
    jax.block_until_ready((out_a, hid_a))
    assert out_a.shape == (seq_len, batch, output_size)
    assert hid_a.shape == (seq_len, batch, hidden_size)
    assert jnp.allclose(hid_a, hid_ref_f32, atol=1e-4, rtol=1e-4)
    assert jnp.allclose(out_a, out_ref_f32, atol=1e-4, rtol=1e-4)

    # Run 2: bf16 matmul operands (default) + default larger time chunk.
    out_b, hid_b = lowrank_rnn_forward(x, w_in, b_in, U, V, w_fc, b_fc,
                                       alpha=alpha, rnn_std=rnn_std, seed=0)
    jax.block_until_ready((out_b, hid_b))
    assert out_b.shape == (seq_len, batch, output_size)
    assert hid_b.shape == (seq_len, batch, hidden_size)
    # Tight against the bf16-operand reference (identical casts, f32 acc).
    assert jnp.allclose(hid_b, hid_ref_bf, atol=5e-4, rtol=5e-3)
    assert jnp.allclose(out_b, out_ref_bf, atol=5e-4, rtol=5e-3)
    # Loose sanity against the exact-f32 reference (bf16 rounding only).
    rel = lambda a, b: float(jnp.linalg.norm(a - b)
                             / (jnp.linalg.norm(b) + 1e-8))
    assert rel(hid_b, hid_ref_f32) < 0.1
    assert rel(out_b, out_ref_f32) < 0.1

    print("KERNEL_OK")
</pallas_src>

<mosaic_0001>
module attributes {stable_mosaic.version = 11 : i64} {
  func.func @_lowrank_rnn_kernel(%arg0: i32, %arg1: memref<1xi32, #tpu.memory_space<smem>>, %arg2: memref<32x4xf32, #tpu.memory_space<vmem>>, %arg3: memref<4x128xf32, #tpu.memory_space<vmem>>, %arg4: memref<1x128xf32, #tpu.memory_space<vmem>>, %arg5: memref<128x128xf32, #tpu.memory_space<vmem>>, %arg6: memref<128x128xf32, #tpu.memory_space<vmem>>, %arg7: memref<1x128xf32, #tpu.memory_space<vmem>>, %arg8: memref<32x128xf32, #tpu.memory_space<vmem>>, %arg9: memref<32x128xf32, #tpu.memory_space<vmem>>, %arg10: memref<8x128xf32, #tpu.memory_space<vmem>>, %arg11: memref<32x128xf32, #tpu.memory_space<vmem>>) attributes {dimension_semantics = [#tpu.dimension_semantics<arbitrary>], iteration_bounds = array<i64: 3>, scalar_prefetch = 1 : i64, scratch_operands = 2 : i64, tpu.core_type = #tpu.core_type<tc>, window_params = [{transform_indices = @transform_0, window_bounds = array<i64: 32, 4>}, {pipeline_mode = #tpu.pipeline_mode<synchronous>, transform_indices = @transform_1, window_bounds = array<i64: 4, 128>}, {pipeline_mode = #tpu.pipeline_mode<synchronous>, transform_indices = @transform_2, window_bounds = array<i64: 1, 128>}, {pipeline_mode = #tpu.pipeline_mode<synchronous>, transform_indices = @transform_3, window_bounds = array<i64: 128, 128>}, {pipeline_mode = #tpu.pipeline_mode<synchronous>, transform_indices = @transform_4, window_bounds = array<i64: 128, 128>}, {pipeline_mode = #tpu.pipeline_mode<synchronous>, transform_indices = @transform_5, window_bounds = array<i64: 1, 128>}, {transform_indices = @transform_6, window_bounds = array<i64: 32, 128>}, {transform_indices = @transform_7, window_bounds = array<i64: 32, 128>}]} {
    %c0_i32 = arith.constant 0 : i32
    %0 = arith.cmpi eq, %arg0, %c0_i32 : i32
    %1 = arith.extui %0 : i1 to i32
    %c0_i32_0 = arith.constant 0 : i32
    %2 = arith.cmpi ne, %1, %c0_i32_0 : i32
    scf.if %2 {
      %cst_57 = arith.constant 0.000000e+00 : f32
      %83 = vector.broadcast %cst_57 : f32 to vector<8x128xf32>
      %c0_58 = arith.constant 0 : index
      %c0_59 = arith.constant 0 : index
      %84 = vector.load %arg10[%c0_58, %c0_59] : memref<8x128xf32, #tpu.memory_space<vmem>>, vector<8x128xf32>
      tpu.vector_store %arg10[%c0_58, %c0_59], %83 {strides = array<i32>} : memref<8x128xf32, #tpu.memory_space<vmem>>, vector<8x128xf32>,
    } else {
    }
    %c0 = arith.constant 0 : index
    %c0_1 = arith.constant 0 : index
    %3 = vector.load %arg2[%c0, %c0_1] : memref<32x4xf32, #tpu.memory_space<vmem>>, vector<32x4xf32>
    %c0_2 = arith.constant 0 : index
    %c0_3 = arith.constant 0 : index
    %4 = vector.load %arg3[%c0_2, %c0_3] : memref<4x128xf32, #tpu.memory_space<vmem>>, vector<4x128xf32>
    %cst = arith.constant dense<0.000000e+00> : vector<32x128xf32>
    %5 = tpu.matmul %3, %4, %cst {dimension_numbers = #tpu.dot_dimension_numbers<[1], [0], [0], [1], [0, 0, 1, 1], [], []>} : vector<32x4xf32>, vector<4x128xf32>, vector<32x128xf32> -> vector<32x128xf32>
    %c0_4 = arith.constant 0 : index
    %c0_5 = arith.constant 0 : index
    %6 = vector.load %arg4[%c0_4, %c0_5] : memref<1x128xf32, #tpu.memory_space<vmem>>, vector<1x128xf32>
    %7 = vector.broadcast %6 : vector<1x128xf32> to vector<32x128xf32>
    %8 = arith.addf %5, %7 : vector<32x128xf32>
    %c0_6 = arith.constant 0 : index
    %c0_7 = arith.constant 0 : index
    %9 = vector.load %arg11[%c0_6, %c0_7] : memref<32x128xf32, #tpu.memory_space<vmem>>, vector<32x128xf32>
    tpu.vector_store %arg11[%c0_6, %c0_7], %8 {strides = array<i32>} : memref<32x128xf32, #tpu.memory_space<vmem>>, vector<32x128xf32>,
    %c0_8 = arith.constant 0 : index
    %c0_9 = arith.constant 0 : index
    %10 = vector.load %arg10[%c0_8, %c0_9] : memref<8x128xf32, #tpu.memory_space<vmem>>, vector<8x128xf32>
    %c0_i32_10 = arith.constant 0 : i32
    %c8_i32 = arith.constant 8 : i32
    %11 = arith.muli %c0_i32_10, %c8_i32 : i32
    %12 = tpu.assume_multiple %11, 8 : i32
    %c0_11 = arith.constant 0 : index
    %c0_12 = arith.constant 0 : index
    %13 = vector.load %arg5[%c0_11, %c0_12] : memref<128x128xf32, #tpu.memory_space<vmem>>, vector<128x128xf32>
    %cst_13 = arith.constant dense<0.000000e+00> : vector<8x128xf32>
    %14 = tpu.matmul %10, %13, %cst_13 {dimension_numbers = #tpu.dot_dimension_numbers<[1], [0], [0], [1], [0, 0, 1, 1], [], []>} : vector<8x128xf32>, vector<128x128xf32>, vector<8x128xf32> -> vector<8x128xf32>
    %15 = arith.index_cast %12 : i32 to index
    %c0_14 = arith.constant 0 : index
    %16 = vector.load %arg11[%15, %c0_14] : memref<32x128xf32, #tpu.memory_space<vmem>>, vector<8x128xf32>
    %17 = arith.addf %16, %14 : vector<8x128xf32>
    %cst_15 = arith.constant 0.000000e+00 : f32
    %18 = vector.broadcast %cst_15 : f32 to vector<8x128xf32>
    %19 = arith.maximumf %17, %18 : vector<8x128xf32>
    %cst_16 = arith.constant 0.899999976 : f32
    %20 = vector.broadcast %cst_16 : f32 to vector<8x128xf32>
    %21 = arith.mulf %10, %20 : vector<8x128xf32>
    %cst_17 = arith.constant 1.000000e-01 : f32
    %22 = vector.broadcast %cst_17 : f32 to vector<8x128xf32>
    %23 = arith.mulf %19, %22 : vector<8x128xf32>
    %24 = arith.addf %21, %23 : vector<8x128xf32>
    %25 = arith.index_cast %12 : i32 to index
    %c0_18 = arith.constant 0 : index
    %26 = vector.load %arg8[%25, %c0_18] : memref<32x128xf32, #tpu.memory_space<vmem>>, vector<8x128xf32>
    tpu.vector_store %arg8[%25, %c0_18], %24 {strides = array<i32>} : memref<32x128xf32, #tpu.memory_space<vmem>>, vector<8x128xf32>,
    %c1_i32 = arith.constant 1 : i32
    %c8_i32_19 = arith.constant 8 : i32
    %27 = arith.muli %c1_i32, %c8_i32_19 : i32
    %28 = tpu.assume_multiple %27, 8 : i32
    %c0_20 = arith.constant 0 : index
    %c0_21 = arith.constant 0 : index
    %29 = vector.load %arg5[%c0_20, %c0_21] : memref<128x128xf32, #tpu.memory_space<vmem>>, vector<128x128xf32>
    %cst_22 = arith.constant dense<0.000000e+00> : vector<8x128xf32>
    %30 = tpu.matmul %24, %29, %cst_22 {dimension_numbers = #tpu.dot_dimension_numbers<[1], [0], [0], [1], [0, 0, 1, 1], [], []>} : vector<8x128xf32>, vector<128x128xf32>, vector<8x128xf32> -> vector<8x128xf32>
    %31 = arith.index_cast %28 : i32 to index
    %c0_23 = arith.constant 0 : index
    %32 = vector.load %arg11[%31, %c0_23] : memref<32x128xf32, #tpu.memory_space<vmem>>, vector<8x128xf32>
    %33 = arith.addf %32, %30 : vector<8x128xf32>
    %cst_24 = arith.constant 0.000000e+00 : f32
    %34 = vector.broadcast %cst_24 : f32 to vector<8x128xf32>
    %35 = arith.maximumf %33, %34 : vector<8x128xf32>
    %cst_25 = arith.constant 0.899999976 : f32
    %36 = vector.broadcast %cst_25 : f32 to vector<8x128xf32>
    %37 = arith.mulf %24, %36 : vector<8x128xf32>
    %cst_26 = arith.constant 1.000000e-01 : f32
    %38 = vector.broadcast %cst_26 : f32 to vector<8x128xf32>
    %39 = arith.mulf %35, %38 : vector<8x128xf32>
    %40 = arith.addf %37, %39 : vector<8x128xf32>
    %41 = arith.index_cast %28 : i32 to index
    %c0_27 = arith.constant 0 : index
    %42 = vector.load %arg8[%41, %c0_27] : memref<32x128xf32, #tpu.memory_space<vmem>>, vector<8x128xf32>
    tpu.vector_store %arg8[%41, %c0_27], %40 {strides = array<i32>} : memref<32x128xf32, #tpu.memory_space<vmem>>, vector<8x128xf32>,
    %c2_i32 = arith.constant 2 : i32
    %c8_i32_28 = arith.constant 8 : i32
    %43 = arith.muli %c2_i32, %c8_i32_28 : i32
    %44 = tpu.assume_multiple %43, 8 : i32
    %c0_29 = arith.constant 0 : index
    %c0_30 = arith.constant 0 : index
    %45 = vector.load %arg5[%c0_29, %c0_30] : memref<128x128xf32, #tpu.memory_space<vmem>>, vector<128x128xf32>
    %cst_31 = arith.constant dense<0.000000e+00> : vector<8x128xf32>
    %46 = tpu.matmul %40, %45, %cst_31 {dimension_numbers = #tpu.dot_dimension_numbers<[1], [0], [0], [1], [0, 0, 1, 1], [], []>} : vector<8x128xf32>, vector<128x128xf32>, vector<8x128xf32> -> vector<8x128xf32>
    %47 = arith.index_cast %44 : i32 to index
    %c0_32 = arith.constant 0 : index
    %48 = vector.load %arg11[%47, %c0_32] : memref<32x128xf32, #tpu.memory_space<vmem>>, vector<8x128xf32>
    %49 = arith.addf %48, %46 : vector<8x128xf32>
    %cst_33 = arith.constant 0.000000e+00 : f32
    %50 = vector.broadcast %cst_33 : f32 to vector<8x128xf32>
    %51 = arith.maximumf %49, %50 : vector<8x128xf32>
    %cst_34 = arith.constant 0.899999976 : f32
    %52 = vector.broadcast %cst_34 : f32 to vector<8x128xf32>
    %53 = arith.mulf %40, %52 : vector<8x128xf32>
    %cst_35 = arith.constant 1.000000e-01 : f32
    %54 = vector.broadcast %cst_35 : f32 to vector<8x128xf32>
    %55 = arith.mulf %51, %54 : vector<8x128xf32>
    %56 = arith.addf %53, %55 : vector<8x128xf32>
    %57 = arith.index_cast %44 : i32 to index
    %c0_36 = arith.constant 0 : index
    %58 = vector.load %arg8[%57, %c0_36] : memref<32x128xf32, #tpu.memory_space<vmem>>, vector<8x128xf32>
    tpu.vector_store %arg8[%57, %c0_36], %56 {strides = array<i32>} : memref<32x128xf32, #tpu.memory_space<vmem>>, vector<8x128xf32>,
    %c3_i32 = arith.constant 3 : i32
    %c8_i32_37 = arith.constant 8 : i32
    %59 = arith.muli %c3_i32, %c8_i32_37 : i32
    %60 = tpu.assume_multiple %59, 8 : i32
    %c0_38 = arith.constant 0 : index
    %c0_39 = arith.constant 0 : index
    %61 = vector.load %arg5[%c0_38, %c0_39] : memref<128x128xf32, #tpu.memory_space<vmem>>, vector<128x128xf32>
    %cst_40 = arith.constant dense<0.000000e+00> : vector<8x128xf32>
    %62 = tpu.matmul %56, %61, %cst_40 {dimension_numbers = #tpu.dot_dimension_numbers<[1], [0], [0], [1], [0, 0, 1, 1], [], []>} : vector<8x128xf32>, vector<128x128xf32>, vector<8x128xf32> -> vector<8x128xf32>
    %63 = arith.index_cast %60 : i32 to index
    %c0_41 = arith.constant 0 : index
    %64 = vector.load %arg11[%63, %c0_41] : memref<32x128xf32, #tpu.memory_space<vmem>>, vector<8x128xf32>
    %65 = arith.addf %64, %62 : vector<8x128xf32>
    %cst_42 = arith.constant 0.000000e+00 : f32
    %66 = vector.broadcast %cst_42 : f32 to vector<8x128xf32>
    %67 = arith.maximumf %65, %66 : vector<8x128xf32>
    %cst_43 = arith.constant 0.899999976 : f32
    %68 = vector.broadcast %cst_43 : f32 to vector<8x128xf32>
    %69 = arith.mulf %56, %68 : vector<8x128xf32>
    %cst_44 = arith.constant 1.000000e-01 : f32
    %70 = vector.broadcast %cst_44 : f32 to vector<8x128xf32>
    %71 = arith.mulf %67, %70 : vector<8x128xf32>
    %72 = arith.addf %69, %71 : vector<8x128xf32>
    %73 = arith.index_cast %60 : i32 to index
    %c0_45 = arith.constant 0 : index
    %74 = vector.load %arg8[%73, %c0_45] : memref<32x128xf32, #tpu.memory_space<vmem>>, vector<8x128xf32>
    tpu.vector_store %arg8[%73, %c0_45], %72 {strides = array<i32>} : memref<32x128xf32, #tpu.memory_space<vmem>>, vector<8x128xf32>,
    %c4_i32 = arith.constant 4 : i32
    %c0_46 = arith.constant 0 : index
    %c0_47 = arith.constant 0 : index
    %75 = vector.load %arg10[%c0_46, %c0_47] : memref<8x128xf32, #tpu.memory_space<vmem>>, vector<8x128xf32>
    tpu.vector_store %arg10[%c0_46, %c0_47], %72 {strides = array<i32>} : memref<8x128xf32, #tpu.memory_space<vmem>>, vector<8x128xf32>,
    %c0_48 = arith.constant 0 : index
    %c0_49 = arith.constant 0 : index
    %76 = vector.load %arg8[%c0_48, %c0_49] : memref<32x128xf32, #tpu.memory_space<vmem>>, vector<32x128xf32>
    %c0_50 = arith.constant 0 : index
    %c0_51 = arith.constant 0 : index
    %77 = vector.load %arg6[%c0_50, %c0_51] : memref<128x128xf32, #tpu.memory_space<vmem>>, vector<128x128xf32>
    %cst_52 = arith.constant dense<0.000000e+00> : vector<32x128xf32>
    %78 = tpu.matmul %76, %77, %cst_52 {dimension_numbers = #tpu.dot_dimension_numbers<[1], [0], [0], [1], [0, 0, 1, 1], [], []>} : vector<32x128xf32>, vector<128x128xf32>, vector<32x128xf32> -> vector<32x128xf32>
    %c0_53 = arith.constant 0 : index
    %c0_54 = arith.constant 0 : index
    %79 = vector.load %arg7[%c0_53, %c0_54] : memref<1x128xf32, #tpu.memory_space<vmem>>, vector<1x128xf32>
    %80 = vector.broadcast %79 : vector<1x128xf32> to vector<32x128xf32>
    %81 = arith.addf %78, %80 : vector<32x128xf32>
    %c0_55 = arith.constant 0 : index
    %c0_56 = arith.constant 0 : index
    %82 = vector.load %arg9[%c0_55, %c0_56] : memref<32x128xf32, #tpu.memory_space<vmem>>, vector<32x128xf32>
    tpu.vector_store %arg9[%c0_55, %c0_56], %81 {strides = array<i32>} : memref<32x128xf32, #tpu.memory_space<vmem>>, vector<32x128xf32>,
    return
  }
  func.func @transform_0(%arg0: i32, %arg1: memref<1xi32, #tpu.memory_space<smem>>) -> (i32, i32) {
    %c0_i32 = arith.constant 0 : i32
    %c0_i32_0 = arith.constant 0 : i32
    return %arg0, %c0_i32 : i32, i32
  }
  func.func @transform_1(%arg0: i32, %arg1: memref<1xi32, #tpu.memory_space<smem>>) -> (i32, i32) {
    %c0_i32 = arith.constant 0 : i32
    %c0_i32_0 = arith.constant 0 : i32
    %c0_i32_1 = arith.constant 0 : i32
    return %c0_i32, %c0_i32_0 : i32, i32
  }
  func.func @transform_2(%arg0: i32, %arg1: memref<1xi32, #tpu.memory_space<smem>>) -> (i32, i32) {
    %c0_i32 = arith.constant 0 : i32
    %c0_i32_0 = arith.constant 0 : i32
    %c0_i32_1 = arith.constant 0 : i32
    return %c0_i32, %c0_i32_0 : i32, i32
  }
  func.func @transform_3(%arg0: i32, %arg1: memref<1xi32, #tpu.memory_space<smem>>) -> (i32, i32) {
    %c0_i32 = arith.constant 0 : i32
    %c0_i32_0 = arith.constant 0 : i32
    %c0_i32_1 = arith.constant 0 : i32
    return %c0_i32, %c0_i32_0 : i32, i32
  }
  func.func @transform_4(%arg0: i32, %arg1: memref<1xi32, #tpu.memory_space<smem>>) -> (i32, i32) {
    %c0_i32 = arith.constant 0 : i32
    %c0_i32_0 = arith.constant 0 : i32
    %c0_i32_1 = arith.constant 0 : i32
    return %c0_i32, %c0_i32_0 : i32, i32
  }
  func.func @transform_5(%arg0: i32, %arg1: memref<1xi32, #tpu.memory_space<smem>>) -> (i32, i32) {
    %c0_i32 = arith.constant 0 : i32
    %c0_i32_0 = arith.constant 0 : i32
    %c0_i32_1 = arith.constant 0 : i32
    return %c0_i32, %c0_i32_0 : i32, i32
  }
  func.func @transform_6(%arg0: i32, %arg1: memref<1xi32, #tpu.memory_space<smem>>) -> (i32, i32) {
    %c0_i32 = arith.constant 0 : i32
    %c0_i32_0 = arith.constant 0 : i32
    return %arg0, %c0_i32 : i32, i32
  }
  func.func @transform_7(%arg0: i32, %arg1: memref<1xi32, #tpu.memory_space<smem>>) -> (i32, i32) {
    %c0_i32 = arith.constant 0 : i32
    %c0_i32_0 = arith.constant 0 : i32
    return %arg0, %c0_i32 : i32, i32
  }
}

</mosaic_0001>

<llo_original>
// kernel: tpu_custom_call.1
$region0: #{tpu_custom_call.1}
  #allocation0 [shape = 'u32[]', space=smem, size = 0x4, offset = 0x4, fixed_abs, tag = 'smem constant byte address 0x4 - core index']
  #allocation1 [shape = 'u32[72,128]{1,0:T(1,128)}', space=vmem, size = 0x9000, scoped, tag = 'internal scratch']
  #allocation2 [shape = 'f32[8,128]{1,0:T(8,128)}', space=vmem, size = 0x1000, scoped, tag = 'scratch operand']
  #allocation3 [shape = 'f32[32,128]{1,0:T(8,128)}', space=vmem, size = 0x4000, scoped, tag = 'scratch operand']
  #allocation4 [shape = 's32[1]{0}', space=sflag, size = 0x4, scoped, tag = 'scoped memory for tpu_custom_call.1']
  #allocation5 [shape = 's32[1]{0:T(128)S(6)}', space=smem, size = 0x200, scoped, tag = 'prefetched SMEM operand 0']
  %s0 = inlined_call_operand.<no memory space> [shape: s32[1], index: 0, kind: input, shape index: {}]
  %s1 = inlined_call_operand.vmem [shape: f32[96,4], index: 1, kind: input, shape index: {}]
  %s2 = inlined_call_operand.vmem [shape: f32[4,128], index: 2, kind: input, shape index: {}]
  %s3 = inlined_call_operand.vmem [shape: f32[1,128], index: 3, kind: input, shape index: {}]
  %s4 = inlined_call_operand.hbm [shape: f32[128,128], index: 4, kind: input, shape index: {}]
  %s5 = inlined_call_operand.hbm [shape: f32[128,128], index: 5, kind: input, shape index: {}]
  %s6 = inlined_call_operand.vmem [shape: f32[1,128], index: 6, kind: input, shape index: {}]
  %s7 = inlined_call_operand.hbm [shape: f32[96,128], index: 7, kind: output, shape index: {0}]
  %s8 = inlined_call_operand.hbm [shape: f32[96,128], index: 8, kind: output, shape index: {1}]
  %9 = xla_tuple %s7, %s8
  %s10 = sld [smem:[#allocation0]]
  $region77: #{tpu_custom_call.1} parent=0
    _
  %s12 = ssub.s32 1, %s10
  %s13 = scalar_select 0, %s12, %s10
  %14 = sst [smem:[#allocation5]] %s0
  $region1: #{tpu_custom_call.1} parent=0
    #allocation6 [shape = 'u8[65536]{0}', space=vmem, size = 0x10000, scoped, tag = 'input window, operand 4, single buffered']
    #allocation7 [shape = 's32[2]{0}', space=sflag, size = 0x8, scoped, tag = 'scoped memory for tpu_custom_call.1']
    #allocation8 [shape = 's32[2]{0}', space=sflag, size = 0x8, scoped, tag = 'scoped memory for tpu_custom_call.1']
    #allocation9 [shape = 'u8[65536]{0}', space=vmem, size = 0x10000, scoped, tag = 'input window, operand 5, single buffered']
    #allocation10 [shape = 's32[1]{0}', space=sflag, size = 0x4, scoped, tag = 'scoped memory for tpu_custom_call.1']
    #allocation11 [shape = 'u8[32768]{0}', space=vmem, size = 0x8000, scoped, tag = 'output window, operand 0']
    #allocation12 [shape = 'u8[32768]{0}', space=vmem, size = 0x8000, scoped, tag = 'output window, operand 1']
    #allocation13 [shape = 's32[2]{0}', space=sflag, size = 0x8, scoped, tag = 'scoped memory for tpu_custom_call.1']
    %15 = vsyncpa [#allocation7], 0
    %16 = vsyncpa [#allocation10], 0
    %17 = vsyncpa [#allocation8], 0
    %s18 = scalar_lea.sflag [#allocation8], 1
    %19 = vsyncpa %s18, 0
    %20 = vsyncpa [#allocation13], 0
    %s21 = scalar_lea.sflag [#allocation13], 1
    %22 = vsyncpa %s21, 0
    loop: start=0, step=1, limit=5
    $region2: #{tpu_custom_call.1} parent=1 // loop_pre_header
      _
    $region3: #{tpu_custom_call.1} parent=1 // loop_header
      %s24 = sphi 0, %s28
      %p25 = scmp.ge.s32.totalorder %s24, 5
      %s34 = sphi 0, %s36
      %s37 = sphi 0, %s34
      %s38 = sphi 0, %s37
      %s54 = sphi 0, %s38
      %s58 = sphi 0, %s58
      %s60 = sphi 0, %s58
      %s61 = sphi 0, %s60
      %s75 = sphi 0, %s61
      %s79 = sphi 0, %s79
      %s81 = sphi 0, %s79
      %s82 = sphi 0, %s81
      %s96 = sphi 0, %s82
      %s100 = sphi 0, %s100
      %s102 = sphi 0, %s100
      %s103 = sphi 0, %s102
      %s117 = sphi 0, %s103
      %s121 = sphi 0, %s121
      %s123 = sphi 0, %s121
      %s124 = sphi 0, %s123
      %s138 = sphi 0, %s124
      %s142 = sphi 0, %s142
      %s144 = sphi 0, %s142
      %s145 = sphi 0, %s144
      %s159 = sphi 0, %s145
      %s165 = sphi 0, %s167
      %s168 = sphi 0, %s165
      %s169 = sphi 0, %s168
      %s185 = sphi 0, %s169
      %s191 = sphi 0, %s193
      %s194 = sphi 0, %s191
      %s195 = sphi 0, %s194
      %s211 = sphi 0, %s195
    $region4: #{tpu_custom_call.1} parent=1 // loop_header_branch
      %27 = sbr.rel (%p25) target = $region8
    $region5: #{tpu_custom_call.1} parent=1 // loop_body
      %s29 = ssub.s32 %s24, 1
      %s30 = ssub.s32 %s24, 2
      %s31 = sadd.s32 %s24, 1
      %s32 = ssub.s32 %s24, %s31
      %p33 = scmp.eq.s32.totalorder %s32, 0
      %s35 = sadd.s32 %s34, 1
      %s36 = scalar_select %p33, %s34, %s35
      %p39 = pneg %p33
      %p40 = scmp.eq.s32.totalorder %s24, 2
      %p41 = por %p39, %p40
      %p42 = scmp.ne.s32.totalorder %s34, %s37
      %p43 = scmp.eq.s32.totalorder %s24, 0
      %p44 = por %p42, %p43
      %p45 = scmp.ne.s32.totalorder %s34, %s37
      %p46 = scmp.eq.s32.totalorder %s29, 2
      %p47 = por %p45, %p46
      %p48 = scmp.ne.s32.totalorder %s37, %s38
      %p49 = scmp.eq.s32.totalorder %s29, 0
      %p50 = por %p48, %p49
      %p51 = scmp.ne.s32.totalorder %s37, %s38
      %p52 = scmp.eq.s32.totalorder %s30, 2
      %p53 = por %p51, %p52
      %p55 = scmp.ne.s32.totalorder %s38, %s54
      %p56 = scmp.eq.s32.totalorder %s30, 0
      %p57 = por %p55, %p56
      %s59 = sadd.s32 %s58, 1
      %p62 = scmp.eq.s32.totalorder %s24, 2
      %p63 = scmp.ne.s32.totalorder %s58, %s60
      %p64 = scmp.eq.s32.totalorder %s24, 0
      %p65 = por %p63, %p64
      %p66 = scmp.ne.s32.totalorder %s58, %s60
      %p67 = scmp.eq.s32.totalorder %s29, 2
      %p68 = por %p66, %p67
      %p69 = scmp.ne.s32.totalorder %s60, %s61
      %p70 = scmp.eq.s32.totalorder %s29, 0
      %p71 = por %p69, %p70
      %p72 = scmp.ne.s32.totalorder %s60, %s61
      %p73 = scmp.eq.s32.totalorder %s30, 2
      %p74 = por %p72, %p73
      %p76 = scmp.ne.s32.totalorder %s61, %s75
      %p77 = scmp.eq.s32.totalorder %s30, 0
      %p78 = por %p76, %p77
      %s80 = sadd.s32 %s79, 1
      %p83 = scmp.eq.s32.totalorder %s24, 2
      %p84 = scmp.ne.s32.totalorder %s79, %s81
      %p85 = scmp.eq.s32.totalorder %s24, 0
      %p86 = por %p84, %p85
      %p87 = scmp.ne.s32.totalorder %s79, %s81
      %p88 = scmp.eq.s32.totalorder %s29, 2
      %p89 = por %p87, %p88
      %p90 = scmp.ne.s32.totalorder %s81, %s82
      %p91 = scmp.eq.s32.totalorder %s29, 0
      %p92 = por %p90, %p91
      %p93 = scmp.ne.s32.totalorder %s81, %s82
      %p94 = scmp.eq.s32.totalorder %s30, 2
      %p95 = por %p93, %p94
      %p97 = scmp.ne.s32.totalorder %s82, %s96
      %p98 = scmp.eq.s32.totalorder %s30, 0
      %p99 = por %p97, %p98
      %s101 = sadd.s32 %s100, 1
      %p104 = scmp.eq.s32.totalorder %s24, 2
      %p105 = scmp.ne.s32.totalorder %s100, %s102
      %p106 = scmp.eq.s32.totalorder %s24, 0
      %p107 = por %p105, %p106
      %p108 = scmp.ne.s32.totalorder %s100, %s102
      %p109 = scmp.eq.s32.totalorder %s29, 2
      %p110 = por %p108, %p109
      %p111 = scmp.ne.s32.totalorder %s102, %s103
      %p112 = scmp.eq.s32.totalorder %s29, 0
      %p113 = por %p111, %p112
      %p114 = scmp.ne.s32.totalorder %s102, %s103
      %p115 = scmp.eq.s32.totalorder %s30, 2
      %p116 = por %p114, %p115
      %p118 = scmp.ne.s32.totalorder %s103, %s117
      %p119 = scmp.eq.s32.totalorder %s30, 0
      %p120 = por %p118, %p119
      %s122 = sadd.s32 %s121, 1
      %p125 = scmp.eq.s32.totalorder %s24, 2
      %p126 = scmp.ne.s32.totalorder %s121, %s123
      %p127 = scmp.eq.s32.totalorder %s24, 0
      %p128 = por %p126, %p127
      %p129 = scmp.ne.s32.totalorder %s121, %s123
      %p130 = scmp.eq.s32.totalorder %s29, 2
      %p131 = por %p129, %p130
      %p132 = scmp.ne.s32.totalorder %s123, %s124
      %p133 = scmp.eq.s32.totalorder %s29, 0
      %p134 = por %p132, %p133
      %p135 = scmp.ne.s32.totalorder %s123, %s124
      %p136 = scmp.eq.s32.totalorder %s30, 2
      %p137 = por %p135, %p136
      %p139 = scmp.ne.s32.totalorder %s124, %s138
      %p140 = scmp.eq.s32.totalorder %s30, 0
      %p141 = por %p139, %p140
      %s143 = sadd.s32 %s142, 1
      %p146 = scmp.eq.s32.totalorder %s24, 2
      %p147 = scmp.ne.s32.totalorder %s142, %s144
      %p148 = scmp.eq.s32.totalorder %s24, 0
      %p149 = por %p147, %p148
      %p150 = scmp.ne.s32.totalorder %s142, %s144
      %p151 = scmp.eq.s32.totalorder %s29, 2
      %p152 = por %p150, %p151
      %p153 = scmp.ne.s32.totalorder %s144, %s145
      %p154 = scmp.eq.s32.totalorder %s29, 0
      %p155 = por %p153, %p154
      %p156 = scmp.ne.s32.totalorder %s144, %s145
      %p157 = scmp.eq.s32.totalorder %s30, 2
      %p158 = por %p156, %p157
      %p160 = scmp.ne.s32.totalorder %s145, %s159
      %p161 = scmp.eq.s32.totalorder %s30, 0
      %p162 = por %p160, %p161
      %s163 = ssub.s32 %s24, %s31
      %p164 = scmp.eq.s32.totalorder %s163, 0
      %s166 = sadd.s32 %s165, 1
      %s167 = scalar_select %p164, %s165, %s166
      %p170 = pneg %p164
      %p171 = scmp.eq.s32.totalorder %s24, 2
      %p172 = por %p170, %p171
      %p173 = scmp.ne.s32.totalorder %s165, %s168
      %p174 = scmp.eq.s32.totalorder %s24, 0
      %p175 = por %p173, %p174
      %p176 = scmp.ne.s32.totalorder %s165, %s168
      %p177 = scmp.eq.s32.totalorder %s29, 2
      %p178 = por %p176, %p177
      %p179 = scmp.ne.s32.totalorder %s168, %s169
      %p180 = scmp.eq.s32.totalorder %s29, 0
      %p181 = por %p179, %p180
      %p182 = scmp.ne.s32.totalorder %s168, %s169
      %p183 = scmp.eq.s32.totalorder %s30, 2
      %p184 = por %p182, %p183
      %p186 = scmp.ne.s32.totalorder %s169, %s185
      %p187 = scmp.eq.s32.totalorder %s30, 0
      %p188 = por %p186, %p187
      %s189 = ssub.s32 %s24, %s31
      %p190 = scmp.eq.s32.totalorder %s189, 0
      %s192 = sadd.s32 %s191, 1
      %s193 = scalar_select %p190, %s191, %s192
      %p196 = pneg %p190
      %p197 = scmp.eq.s32.totalorder %s24, 2
      %p198 = por %p196, %p197
      %p199 = scmp.ne.s32.totalorder %s191, %s194
      %p200 = scmp.eq.s32.totalorder %s24, 0
      %p201 = por %p199, %p200
      %p202 = scmp.ne.s32.totalorder %s191, %s194
      %p203 = scmp.eq.s32.totalorder %s29, 2
      %p204 = por %p202, %p203
      %p205 = scmp.ne.s32.totalorder %s194, %s195
      %p206 = scmp.eq.s32.totalorder %s29, 0
      %p207 = por %p205, %p206
      %p208 = scmp.ne.s32.totalorder %s194, %s195
      %p209 = scmp.eq.s32.totalorder %s30, 2
      %p210 = por %p208, %p209
      %p212 = scmp.ne.s32.totalorder %s195, %s211
      %p213 = scmp.eq.s32.totalorder %s30, 0
      %p214 = por %p212, %p213
      %p215 = scmp.le.s32.totalorder 1, %s24
      %p216 = scmp.lt.s32.totalorder %s24, 4
      %p217 = pnand %p215, %p216
      %p218 = pneg %p217
      // Predicated region
      $region9: #{tpu_custom_call.1} parent=5 // pred_check
        _
      $region10: #{tpu_custom_call.1} parent=5 // pred_check_branch
        %220 = sbr.rel (%p217) target = $region12
      $region11: #{tpu_custom_call.1} parent=5 // pred_region
        %s221 = ssub.s32 %s24, 1
        // Predicated region
        $region13: #{tpu_custom_call.1} parent=11 // pred_check
          %p222 = pneg %p71
        $region14: #{tpu_custom_call.1} parent=11 // pred_check_branch
          %224 = sbr.rel (%p222) target = $region16
        $region15: #{tpu_custom_call.1} parent=11 // pred_region
          _
        $region16: #{tpu_custom_call.1} parent=11 // pred_fallthru
          _
        // Predicated region
        $region17: #{tpu_custom_call.1} parent=11 // pred_check
          %p225 = pneg %p92
        $region18: #{tpu_custom_call.1} parent=11 // pred_check_branch
          %227 = sbr.rel (%p225) target = $region20
        $region19: #{tpu_custom_call.1} parent=11 // pred_region
          _
        $region20: #{tpu_custom_call.1} parent=11 // pred_fallthru
          _
        // Predicated region
        $region21: #{tpu_custom_call.1} parent=11 // pred_check
          %p228 = pneg %p113
        $region22: #{tpu_custom_call.1} parent=11 // pred_check_branch
          %230 = sbr.rel (%p228) target = $region24
        $region23: #{tpu_custom_call.1} parent=11 // pred_region
          %232 = vsyncadd [#allocation7], 0
          %s233 = sshll.u32 %s4, 4
          %s234 = int_to_ptr.hbm [resolvable:$true] %s233
          %s235 = sshll.u32 [#allocation6], 4
          %s236 = int_to_ptr.vmem [resolvable:$true] %s235
          %241 = dma.hbm_to_vmem [thread:$0]  %s234, 2048, %s236, [#allocation7], 128, 128, 8
        $region24: #{tpu_custom_call.1} parent=11 // pred_fallthru
          _
        // Predicated region
        $region25: #{tpu_custom_call.1} parent=11 // pred_check
          %p242 = pneg %p134
        $region26: #{tpu_custom_call.1} parent=11 // pred_check_branch
          %244 = sbr.rel (%p242) target = $region28
        $region27: #{tpu_custom_call.1} parent=11 // pred_region
          %246 = vsyncadd [#allocation10], 0
          %s247 = sshll.u32 %s5, 4
          %s248 = int_to_ptr.hbm [resolvable:$true] %s247
          %s249 = sshll.u32 [#allocation9], 4
          %s250 = int_to_ptr.vmem [resolvable:$true] %s249
          %255 = dma.hbm_to_vmem [thread:$0]  %s248, 2048, %s250, [#allocation10], 128, 128, 8
        $region28: #{tpu_custom_call.1} parent=11 // pred_fallthru
          _
        // Predicated region
        $region29: #{tpu_custom_call.1} parent=11 // pred_check
          %p256 = pneg %p155
        $region30: #{tpu_custom_call.1} parent=11 // pred_check_branch
          %258 = sbr.rel (%p256) target = $region32
        $region31: #{tpu_custom_call.1} parent=11 // pred_region
          _
        $region32: #{tpu_custom_call.1} parent=11 // pred_fallthru
          _
      $region12: #{tpu_custom_call.1} parent=5 // pred_fallthru
        _
      %p259 = scmp.lt.s32.totalorder %s24, 3
      // Predicated region
      $region33: #{tpu_custom_call.1} parent=5 // pred_check
        %p260 = pneg %p259
      $region34: #{tpu_custom_call.1} parent=5 // pred_check_branch
        %262 = sbr.rel (%p260) target = $region36
      $region35: #{tpu_custom_call.1} parent=5 // pred_region
        // Predicated region
        $region37: #{tpu_custom_call.1} parent=35 // pred_check
          %p263 = pneg %p44
        $region38: #{tpu_custom_call.1} parent=35 // pred_check_branch
          %265 = sbr.rel (%p263) target = $region40
        $region39: #{tpu_custom_call.1} parent=35 // pred_region
          %s266 = smul.u32 4, %s24
          %p267 = scmp.lt.s32.totalorder %s266, 11
          %s268 = scalar_select %p267, %s266, 11
          %s269 = smul.addr %s268, 8
          %s270 = scalar_lea.vmem %s1, %s269
          %s271 = smul.u32 4, %s24
        $region40: #{tpu_custom_call.1} parent=35 // pred_fallthru
          _
      $region36: #{tpu_custom_call.1} parent=5 // pred_fallthru
        _
      %p272 = scmp.le.s32.totalorder 1, %s24
      %p273 = scmp.lt.s32.totalorder %s24, 4
      %p274 = pnand %p272, %p273
      %p275 = pneg %p274
      // Predicated region
      $region41: #{tpu_custom_call.1} parent=5 // pred_check
        _
      $region42: #{tpu_custom_call.1} parent=5 // pred_check_branch
        %277 = sbr.rel (%p274) target = $region44
      $region43: #{tpu_custom_call.1} parent=5 // pred_region
        %s278 = ssub.s32 %s24, 1
        // Predicated region
        $region45: #{tpu_custom_call.1} parent=43 // pred_check
          %p279 = pneg %p113
        $region46: #{tpu_custom_call.1} parent=43 // pred_check_branch
          %281 = sbr.rel (%p279) target = $region48
        $region47: #{tpu_custom_call.1} parent=43 // pred_region
          %283 = dma.done [#allocation7], 2048
        $region48: #{tpu_custom_call.1} parent=43 // pred_fallthru
          _
        // Predicated region
        $region49: #{tpu_custom_call.1} parent=43 // pred_check
          %p284 = pneg %p134
        $region50: #{tpu_custom_call.1} parent=43 // pred_check_branch
          %286 = sbr.rel (%p284) target = $region52
        $region51: #{tpu_custom_call.1} parent=43 // pred_region
          %288 = dma.done [#allocation10], 2048
        $region52: #{tpu_custom_call.1} parent=43 // pred_fallthru
          _
        %s289 = smul.u32 4, %s29
        %p290 = scmp.lt.s32.totalorder %s289, 11
        %s291 = scalar_select %p290, %s289, 11
        %s292 = smul.addr %s291, 8
        %s293 = scalar_lea.vmem %s1, %s292
        %p294 = pneg %p50
        %p295 = pneg %p47
        %p296 = pneg %p71
        %p297 = pneg %p68
        %p298 = pneg %p92
        %p299 = pneg %p89
        %p300 = pneg %p113
        %p301 = pneg %p110
        %p302 = pneg %p134
        %p303 = pneg %p131
        %p304 = pneg %p155
        %p305 = pneg %p152
        %p306 = pneg %p181
        %p307 = pneg %p178
        %s308 = sand.u32 %s168, 1
        %s309 = scalar_lea.sflag [#allocation8], %s308
        %s310 = sand.u32 %s168, 1
        %s311 = smul.addr %s310, 32
        %s312 = scalar_lea.vmem [#allocation11], %s311
        %p313 = pneg %p207
        %p314 = pneg %p204
        %s315 = sand.u32 %s194, 1
        %s316 = scalar_lea.sflag [#allocation13], %s315
        %s317 = sand.u32 %s194, 1
        %s318 = smul.addr %s317, 32
        %s319 = scalar_lea.vmem [#allocation12], %s318
        %s320 = smul.u32 4, %s29
        %p321 = scmp.lt.s32.totalorder %s320, 11
        %s322 = scalar_select %p321, %s320, 11
        %s323 = smul.addr %s322, 8
        %s324 = scalar_lea.vmem %s1, %s323
        %s325 = smul.u32 4, %s29
        %s326 = smul.u32 4, %s29
        %s327 = smul.u32 4, %s29
        %p328 = scmp.eq.s32.totalorder %s29, 0
        // Predicated region
        $region53: #{tpu_custom_call.1} parent=43 // pred_check
          %p329 = pneg %p328
        $region54: #{tpu_custom_call.1} parent=43 // pred_check_branch
          %331 = sbr.rel (%p329) target = $region56
        $region55: #{tpu_custom_call.1} parent=43 // pred_region
          %332 = vst [vmem:[#allocation2] sm:$0xff] 0.0
        $region56: #{tpu_custom_call.1} parent=43 // pred_fallthru
          _
        %v333 = vld [vmem:[%s324] sm:$0xff]
        %v334 = vld [vmem:[%s324 + $0x8] sm:$0xff]
        %v335 = vld [vmem:[%s324 + $0x10] sm:$0xff]
        %v336 = vld [vmem:[%s324 + $0x18] sm:$0xff]
        %v337 = vld [vmem:[%s2] sm:$0xf]
        %v338 = vld [vmem:[%s3] sm:$0x1]
        %v340 = vperm.slane %v338, 0
        %vm342 = vcmask 31744
        %v344 = vsel %vm342, %v333, 0
        %v347 = vsel %vm342, %v334, 0
        %v350 = vsel %vm342, %v335, 0
        %v353 = vsel %vm342, %v336, 0
        %vm355 = vcmask 1043456
        %v357 = vsel %vm355, %v337, 0
        %359 = vmatpush.msra.mxu0 0.0
        %360 = vmatpush.msra.mxu0 0.0
        %361 = vmatpush.msra.mxu0 0.0
        %362 = vmatpush.msra.mxu0 0.0
        %363 = vmatpush.msra.mxu0 0.0
        %364 = vmatpush.msra.mxu0 0.0
        %365 = vmatpush.msra.mxu0 0.0
        %366 = vmatpush.msra.mxu0 0.0
        %367 = vmatpush.msra.mxu0 0.0
        %368 = vmatpush.msra.mxu0 0.0
        %369 = vmatpush.msra.mxu0 0.0
        %370 = vmatpush.msra.mxu0 0.0
        %371 = vmatpush.msra.mxu0 0.0
        %372 = vmatpush.msra.mxu0 0.0
        %373 = vmatpush.msra.mxu0 0.0
        %374 = vmatpush.msra.mxu0 %v357
        %375 = vmatmul.f32.gmra.mxu0 %v344
        %v376 = vpop.f32.mrf.mxu0
        %v377 = vadd.f32 %v340, %v376
        %378 = vmatmul.f32.gmra.mxu0 %v347
        %v379 = vpop.f32.mrf.mxu0
        %v380 = vadd.f32 %v340, %v379
        %381 = vmatmul.f32.gmra.mxu0 %v350
        %v382 = vpop.f32.mrf.mxu0
        %v383 = vadd.f32 %v340, %v382
        %384 = vmatmul.f32.gmra.mxu0 %v353
        %v385 = vpop.f32.mrf.mxu0
        %v386 = vadd.f32 %v340, %v385
        %387 = vdwg.mxu0
        %388 = vst [vmem:[#allocation3] sm:$0xff] %v377
        %389 = vst [vmem:[#allocation3 + $0x8] sm:$0xff] %v380
        %390 = vst [vmem:[#allocation3 + $0x10] sm:$0xff] %v383
        %391 = vst [vmem:[#allocation3 + $0x18] sm:$0xff] %v386
        %v392 = vld [vmem:[#allocation2] sm:$0xff]
        %v393 = vld [vmem:[#allocation6] sm:$0xff]
        %v394 = vld [vmem:[#allocation6 + $0x8] sm:$0xff]
        %v395 = vld [vmem:[#allocation6 + $0x10] sm:$0xff]
        %v396 = vld [vmem:[#allocation6 + $0x18] sm:$0xff]
        %v397 = vld [vmem:[#allocation6 + $0x20] sm:$0xff]
        %v398 = vld [vmem:[#allocation6 + $0x28] sm:$0xff]
        %v399 = vld [vmem:[#allocation6 + $0x30] sm:$0xff]
        %v400 = vld [vmem:[#allocation6 + $0x38] sm:$0xff]
        %v401 = vld [vmem:[#allocation6 + $0x40] sm:$0xff]
        %v402 = vld [vmem:[#allocation6 + $0x48] sm:$0xff]
        %v403 = vld [vmem:[#allocation6 + $0x50] sm:$0xff]
        %v404 = vld [vmem:[#allocation6 + $0x58] sm:$0xff]
        %v405 = vld [vmem:[#allocation6 + $0x60] sm:$0xff]
        %v406 = vld [vmem:[#allocation6 + $0x68] sm:$0xff]
        %v407 = vld [vmem:[#allocation6 + $0x70] sm:$0xff]
        %v408 = vld [vmem:[#allocation6 + $0x78] sm:$0xff]
        %409 = vmatpush.msra.mxu0 %v408
        %410 = vmatpush.msra.mxu0 %v407
        %411 = vmatpush.msra.mxu0 %v406
        %412 = vmatpush.msra.mxu0 %v405
        %413 = vmatpush.msra.mxu0 %v404
        %414 = vmatpush.msra.mxu0 %v403
        %415 = vmatpush.msra.mxu0 %v402
        %416 = vmatpush.msra.mxu0 %v401
        %417 = vmatpush.msra.mxu0 %v400
        %418 = vmatpush.msra.mxu0 %v399
        %419 = vmatpush.msra.mxu0 %v398
        %420 = vmatpush.msra.mxu0 %v397
        %421 = vmatpush.msra.mxu0 %v396
        %422 = vmatpush.msra.mxu0 %v395
        %423 = vmatpush.msra.mxu0 %v394
        %424 = vmatpush.msra.mxu0 %v393
        %425 = vmatmul.f32.gmra.mxu0 %v392
        %v426 = vpop.f32.mrf.mxu0
        %v427 = vadd.f32 0.0, %v426
        %428 = vdwg.mxu0
        %v429 = vld [vmem:[#allocation3] sm:$0xff]
        %v430 = vadd.f32 %v429, %v427
        %v431 = vmax.f32 %v430, 0.0
        %v432 = vmul.f32 %v392, 0.9
        %v433 = vmul.f32 %v431, 0.1
        %v434 = vadd.f32 %v432, %v433
        %435 = vst [vmem:[%s312] sm:$0xff] %v434
        %v436 = vld [vmem:[#allocation6] sm:$0xff]
        %v437 = vld [vmem:[#allocation6 + $0x8] sm:$0xff]
        %v438 = vld [vmem:[#allocation6 + $0x10] sm:$0xff]
        %v439 = vld [vmem:[#allocation6 + $0x18] sm:$0xff]
        %v440 = vld [vmem:[#allocation6 + $0x20] sm:$0xff]
        %v441 = vld [vmem:[#allocation6 + $0x28] sm:$0xff]
        %v442 = vld [vmem:[#allocation6 + $0x30] sm:$0xff]
        %v443 = vld [vmem:[#allocation6 + $0x38] sm:$0xff]
        %v444 = vld [vmem:[#allocation6 + $0x40] sm:$0xff]
        %v445 = vld [vmem:[#allocation6 + $0x48] sm:$0xff]
        %v446 = vld [vmem:[#allocation6 + $0x50] sm:$0xff]
        %v447 = vld [vmem:[#allocation6 + $0x58] sm:$0xff]
        %v448 = vld [vmem:[#allocation6 + $0x60] sm:$0xff]
        %v449 = vld [vmem:[#allocation6 + $0x68] sm:$0xff]
        %v450 = vld [vmem:[#allocation6 + $0x70] sm:$0xff]
        %v451 = vld [vmem:[#allocation6 + $0x78] sm:$0xff]
        %452 = vmatpush.msra.mxu0 %v451
        %453 = vmatpush.msra.mxu0 %v450
        %454 = vmatpush.msra.mxu0 %v449
        %455 = vmatpush.msra.mxu0 %v448
        %456 = vmatpush.msra.mxu0 %v447
        %457 = vmatpush.msra.mxu0 %v446
        %458 = vmatpush.msra.mxu0 %v445
        %459 = vmatpush.msra.mxu0 %v444
        %460 = vmatpush.msra.mxu0 %v443
        %461 = vmatpush.msra.mxu0 %v442
        %462 = vmatpush.msra.mxu0 %v441
        %463 = vmatpush.msra.mxu0 %v440
        %464 = vmatpush.msra.mxu0 %v439
        %465 = vmatpush.msra.mxu0 %v438
        %466 = vmatpush.msra.mxu0 %v437
        %467 = vmatpush.msra.mxu0 %v436
        %468 = vmatmul.f32.gmra.mxu0 %v434
        %v469 = vpop.f32.mrf.mxu0
        %v470 = vadd.f32 0.0, %v469
        %471 = vdwg.mxu0
        %s472 = scalar_lea.vmem [#allocation3], 8
        %v473 = vld [vmem:[%s472] sm:$0xff]
        %v474 = vadd.f32 %v473, %v470
        %v475 = vmax.f32 %v474, 0.0
        %v476 = vmul.f32 %v434, 0.9
        %v477 = vmul.f32 %v475, 0.1
        %v478 = vadd.f32 %v476, %v477
        %s479 = scalar_lea.vmem %s312, 8 [#allocation11]
        %480 = vst [vmem:[%s479] sm:$0xff] %v478
        %v481 = vld [vmem:[#allocation6] sm:$0xff]
        %v482 = vld [vmem:[#allocation6 + $0x8] sm:$0xff]
        %v483 = vld [vmem:[#allocation6 + $0x10] sm:$0xff]
        %v484 = vld [vmem:[#allocation6 + $0x18] sm:$0xff]
        %v485 = vld [vmem:[#allocation6 + $0x20] sm:$0xff]
        %v486 = vld [vmem:[#allocation6 + $0x28] sm:$0xff]
        %v487 = vld [vmem:[#allocation6 + $0x30] sm:$0xff]
        %v488 = vld [vmem:[#allocation6 + $0x38] sm:$0xff]
        %v489 = vld [vmem:[#allocation6 + $0x40] sm:$0xff]
        %v490 = vld [vmem:[#allocation6 + $0x48] sm:$0xff]
        %v491 = vld [vmem:[#allocation6 + $0x50] sm:$0xff]
        %v492 = vld [vmem:[#allocation6 + $0x58] sm:$0xff]
        %v493 = vld [vmem:[#allocation6 + $0x60] sm:$0xff]
        %v494 = vld [vmem:[#allocation6 + $0x68] sm:$0xff]
        %v495 = vld [vmem:[#allocation6 + $0x70] sm:$0xff]
        %v496 = vld [vmem:[#allocation6 + $0x78] sm:$0xff]
        %497 = vmatpush.msra.mxu0 %v496
        %498 = vmatpush.msra.mxu0 %v495
        %499 = vmatpush.msra.mxu0 %v494
        %500 = vmatpush.msra.mxu0 %v493
        %501 = vmatpush.msra.mxu0 %v492
        %502 = vmatpush.msra.mxu0 %v491
        %503 = vmatpush.msra.mxu0 %v490
        %504 = vmatpush.msra.mxu0 %v489
        %505 = vmatpush.msra.mxu0 %v488
        %506 = vmatpush.msra.mxu0 %v487
        %507 = vmatpush.msra.mxu0 %v486
        %508 = vmatpush.msra.mxu0 %v485
        %509 = vmatpush.msra.mxu0 %v484
        %510 = vmatpush.msra.mxu0 %v483
        %511 = vmatpush.msra.mxu0 %v482
        %512 = vmatpush.msra.mxu0 %v481
        %513 = vmatmul.f32.gmra.mxu0 %v478
        %v514 = vpop.f32.mrf.mxu0
        %v515 = vadd.f32 0.0, %v514
        %516 = vdwg.mxu0
        %s517 = scalar_lea.vmem [#allocation3], 16
        %v518 = vld [vmem:[%s517] sm:$0xff]
        %v519 = vadd.f32 %v518, %v515
        %v520 = vmax.f32 %v519, 0.0
        %v521 = vmul.f32 %v478, 0.9
        %v522 = vmul.f32 %v520, 0.1
        %v523 = vadd.f32 %v521, %v522
        %s524 = scalar_lea.vmem %s312, 16 [#allocation11]
        %525 = vst [vmem:[%s524] sm:$0xff] %v523
        %v526 = vld [vmem:[#allocation6] sm:$0xff]
        %v527 = vld [vmem:[#allocation6 + $0x8] sm:$0xff]
        %v528 = vld [vmem:[#allocation6 + $0x10] sm:$0xff]
        %v529 = vld [vmem:[#allocation6 + $0x18] sm:$0xff]
        %v530 = vld [vmem:[#allocation6 + $0x20] sm:$0xff]
        %v531 = vld [vmem:[#allocation6 + $0x28] sm:$0xff]
        %v532 = vld [vmem:[#allocation6 + $0x30] sm:$0xff]
        %v533 = vld [vmem:[#allocation6 + $0x38] sm:$0xff]
        %v534 = vld [vmem:[#allocation6 + $0x40] sm:$0xff]
        %v535 = vld [vmem:[#allocation6 + $0x48] sm:$0xff]
        %v536 = vld [vmem:[#allocation6 + $0x50] sm:$0xff]
        %v537 = vld [vmem:[#allocation6 + $0x58] sm:$0xff]
        %v538 = vld [vmem:[#allocation6 + $0x60] sm:$0xff]
        %v539 = vld [vmem:[#allocation6 + $0x68] sm:$0xff]
        %v540 = vld [vmem:[#allocation6 + $0x70] sm:$0xff]
        %v541 = vld [vmem:[#allocation6 + $0x78] sm:$0xff]
        %542 = vmatpush.msra.mxu0 %v541
        %543 = vmatpush.msra.mxu0 %v540
        %544 = vmatpush.msra.mxu0 %v539
        %545 = vmatpush.msra.mxu0 %v538
        %546 = vmatpush.msra.mxu0 %v537
        %547 = vmatpush.msra.mxu0 %v536
        %548 = vmatpush.msra.mxu0 %v535
        %549 = vmatpush.msra.mxu0 %v534
        %550 = vmatpush.msra.mxu0 %v533
        %551 = vmatpush.msra.mxu0 %v532
        %552 = vmatpush.msra.mxu0 %v531
        %553 = vmatpush.msra.mxu0 %v530
        %554 = vmatpush.msra.mxu0 %v529
        %555 = vmatpush.msra.mxu0 %v528
        %556 = vmatpush.msra.mxu0 %v527
        %557 = vmatpush.msra.mxu0 %v526
        %558 = vmatmul.f32.gmra.mxu0 %v523
        %v559 = vpop.f32.mrf.mxu0
        %v560 = vadd.f32 0.0, %v559
        %561 = vdwg.mxu0
        %s562 = scalar_lea.vmem [#allocation3], 24
        %v563 = vld [vmem:[%s562] sm:$0xff]
        %v564 = vadd.f32 %v563, %v560
        %v565 = vmax.f32 %v564, 0.0
        %v566 = vmul.f32 %v523, 0.9
        %v567 = vmul.f32 %v565, 0.1
        %v568 = vadd.f32 %v566, %v567
        %s569 = scalar_lea.vmem %s312, 24 [#allocation11]
        %570 = vst [vmem:[%s569] sm:$0xff] %v568
        %571 = vst [vmem:[#allocation2] sm:$0xff] %v568
        %v572 = vld [vmem:[%s312] sm:$0xff]
        %v573 = vld [vmem:[%s312 + $0x8] sm:$0xff]
        %v574 = vld [vmem:[%s312 + $0x10] sm:$0xff]
        %v575 = vld [vmem:[%s312 + $0x18] sm:$0xff]
        %v576 = vld [vmem:[#allocation9] sm:$0xff]
        %v577 = vld [vmem:[#allocation9 + $0x8] sm:$0xff]
        %v578 = vld [vmem:[#allocation9 + $0x10] sm:$0xff]
        %v579 = vld [vmem:[#allocation9 + $0x18] sm:$0xff]
        %v580 = vld [vmem:[#allocation9 + $0x20] sm:$0xff]
        %v581 = vld [vmem:[#allocation9 + $0x28] sm:$0xff]
        %v582 = vld [vmem:[#allocation9 + $0x30] sm:$0xff]
        %v583 = vld [vmem:[#allocation9 + $0x38] sm:$0xff]
        %v584 = vld [vmem:[#allocation9 + $0x40] sm:$0xff]
        %v585 = vld [vmem:[#allocation9 + $0x48] sm:$0xff]
        %v586 = vld [vmem:[#allocation9 + $0x50] sm:$0xff]
        %v587 = vld [vmem:[#allocation9 + $0x58] sm:$0xff]
        %v588 = vld [vmem:[#allocation9 + $0x60] sm:$0xff]
        %v589 = vld [vmem:[#allocation9 + $0x68] sm:$0xff]
        %v590 = vld [vmem:[#allocation9 + $0x70] sm:$0xff]
        %v591 = vld [vmem:[#allocation9 + $0x78] sm:$0xff]
        %v592 = vld [vmem:[%s6] sm:$0x1]
        %v594 = vperm.slane %v592, 0
        %596 = vmatpush.msra.mxu0 %v591
        %597 = vmatpush.msra.mxu0 %v590
        %598 = vmatpush.msra.mxu0 %v589
        %599 = vmatpush.msra.mxu0 %v588
        %600 = vmatpush.msra.mxu0 %v587
        %601 = vmatpush.msra.mxu0 %v586
        %602 = vmatpush.msra.mxu0 %v585
        %603 = vmatpush.msra.mxu0 %v584
        %604 = vmatpush.msra.mxu0 %v583
        %605 = vmatpush.msra.mxu0 %v582
        %606 = vmatpush.msra.mxu0 %v581
        %607 = vmatpush.msra.mxu0 %v580
        %608 = vmatpush.msra.mxu0 %v579
        %609 = vmatpush.msra.mxu0 %v578
        %610 = vmatpush.msra.mxu0 %v577
        %611 = vmatpush.msra.mxu0 %v576
        %612 = vmatmul.f32.gmra.mxu0 %v572
        %v613 = vpop.f32.mrf.mxu0
        %v614 = vadd.f32 %v594, %v613
        %615 = vmatmul.f32.gmra.mxu0 %v573
        %v616 = vpop.f32.mrf.mxu0
        %v617 = vadd.f32 %v594, %v616
        %618 = vmatmul.f32.gmra.mxu0 %v574
        %v619 = vpop.f32.mrf.mxu0
        %v620 = vadd.f32 %v594, %v619
        %621 = vmatmul.f32.gmra.mxu0 %v575
        %v622 = vpop.f32.mrf.mxu0
        %v623 = vadd.f32 %v594, %v622
        %624 = vdwg.mxu0
        %625 = vst [vmem:[%s319] sm:$0xff] %v614
        %626 = vst [vmem:[%s319 + $0x8] sm:$0xff] %v617
        %627 = vst [vmem:[%s319 + $0x10] sm:$0xff] %v620
        %628 = vst [vmem:[%s319 + $0x18] sm:$0xff] %v623
        %s629 = sand.u32 %s168, 1
        %s630 = scalar_lea.sflag [#allocation8], %s629
        %s631 = sand.u32 %s168, 1
        %s632 = smul.addr %s631, 32
        %s633 = scalar_lea.vmem [#allocation11], %s632
        %s634 = sand.u32 %s194, 1
        %s635 = scalar_lea.sflag [#allocation13], %s634
        %s636 = sand.u32 %s194, 1
        %s637 = smul.addr %s636, 32
        %s638 = scalar_lea.vmem [#allocation12], %s637
        // Predicated region
        $region57: #{tpu_custom_call.1} parent=43 // pred_check
          %p639 = pneg %p178
        $region58: #{tpu_custom_call.1} parent=43 // pred_check_branch
          %641 = sbr.rel (%p639) target = $region60
        $region59: #{tpu_custom_call.1} parent=43 // pred_region
          %s642 = smul.u32 4, %s29
          %644 = vsyncadd %s630, 0
          %s645 = smul.addr %s642, 8
          %s646 = scalar_lea.hbm %s7, %s645
          %s647 = sshll.u32 %s633, 4
          %s648 = int_to_ptr.vmem [resolvable:$true] %s647
          %s649 = sshll.u32 %s646, 4
          %s650 = int_to_ptr.hbm [resolvable:$true] %s649
          %655 = dma.vmem_to_hbm [thread:$0]  %s648, 512, %s650, %s630, 128, 128, 8
        $region60: #{tpu_custom_call.1} parent=43 // pred_fallthru
          _
        // Predicated region
        $region61: #{tpu_custom_call.1} parent=43 // pred_check
          %p656 = pneg %p204
        $region62: #{tpu_custom_call.1} parent=43 // pred_check_branch
          %658 = sbr.rel (%p656) target = $region64
        $region63: #{tpu_custom_call.1} parent=43 // pred_region
          %s659 = smul.u32 4, %s29
          %661 = vsyncadd %s635, 0
          %s662 = smul.addr %s659, 8
          %s663 = scalar_lea.hbm %s8, %s662
          %s664 = sshll.u32 %s638, 4
          %s665 = int_to_ptr.vmem [resolvable:$true] %s664
          %s666 = sshll.u32 %s663, 4
          %s667 = int_to_ptr.hbm [resolvable:$true] %s666
          %672 = dma.vmem_to_hbm [thread:$0]  %s665, 512, %s667, %s635, 128, 128, 8
        $region64: #{tpu_custom_call.1} parent=43 // pred_fallthru
          _
      $region44: #{tpu_custom_call.1} parent=5 // pred_fallthru
        _
      %p673 = scmp.le.s32.totalorder 2, %s24
      // Predicated region
      $region65: #{tpu_custom_call.1} parent=5 // pred_check
        %p674 = pneg %p673
      $region66: #{tpu_custom_call.1} parent=5 // pred_check_branch
        %676 = sbr.rel (%p674) target = $region68
      $region67: #{tpu_custom_call.1} parent=5 // pred_region
        %s677 = ssub.s32 %s24, 2
        // Predicated region
        $region69: #{tpu_custom_call.1} parent=67 // pred_check
          %p678 = pneg %p184
        $region70: #{tpu_custom_call.1} parent=67 // pred_check_branch
          %680 = sbr.rel (%p678) target = $region72
        $region71: #{tpu_custom_call.1} parent=67 // pred_region
          %s681 = sand.u32 %s169, 1
          %s682 = scalar_lea.sflag [#allocation8], %s681
          %s683 = sand.u32 %s169, 1
          %s684 = smul.addr %s683, 32
          %s685 = scalar_lea.vmem [#allocation11], %s684
          %687 = dma.done %s682, 512
        $region72: #{tpu_custom_call.1} parent=67 // pred_fallthru
          _
        // Predicated region
        $region73: #{tpu_custom_call.1} parent=67 // pred_check
          %p688 = pneg %p210
        $region74: #{tpu_custom_call.1} parent=67 // pred_check_branch
          %690 = sbr.rel (%p688) target = $region76
        $region75: #{tpu_custom_call.1} parent=67 // pred_region
          %s691 = sand.u32 %s195, 1
          %s692 = scalar_lea.sflag [#allocation13], %s691
          %s693 = sand.u32 %s195, 1
          %s694 = smul.addr %s693, 32
          %s695 = scalar_lea.vmem [#allocation12], %s694
          %697 = dma.done %s692, 512
        $region76: #{tpu_custom_call.1} parent=67 // pred_fallthru
          _
      $region68: #{tpu_custom_call.1} parent=5 // pred_fallthru
        _
    $region6: #{tpu_custom_call.1} parent=1 // loop_footer
      %s28 = sadd.s32 1, %s24
    $region7: #{tpu_custom_call.1} parent=1 // loop_footer_branch
      %23 = sbr.rel target = $region3
    $region8: #{tpu_custom_call.1} parent=1 // loop_exit
      _
    %698 = vsyncpa [#allocation7], 1
    %s699 = scalar_lea.sflag [#allocation7], 1
    %700 = vsyncpa %s699, 1
    %701 = vsyncpa [#allocation10], 1
    %702 = vsyncpa [#allocation8], 1
    %s703 = scalar_lea.sflag [#allocation8], 1
    %704 = vsyncpa %s703, 1
    %705 = vsyncpa [#allocation13], 1
    %s706 = scalar_lea.sflag [#allocation13], 1
    %707 = vsyncpa %s706, 1

</llo_original>
